<compile_context>
chip_gen: v7x
topology: tpu7x:2x2x1
jax: 0.10.0
libtpu: 0.0.40
codegen_flags: <defaults>
</compile_context>

<pallas_src>
import functools

import jax
import jax.numpy as jnp
from jax.experimental import pallas as pl
from jax.experimental.pallas import tpu as pltpu


def _round_up(x, m):
    return ((x + m - 1) // m) * m


def _mlp_chain_kernel(n_layers, n_enc, x_ref, w_ref, b_ref, out_ref):
    """Encoder + decoder MLP chain on one lane-dense batch tile.

    x_ref/out_ref: (dp, tb)  -- features on sublanes, batch on lanes.
    w_ref: (n_layers, dp, dp) weight slab, PyTorch (d_out, d_in) layout, zero padded.
    b_ref: (n_layers, dp, 1)  bias slab, zero padded.
    """
    h = x_ref[...].astype(jnp.float32)
    for li in range(n_layers):             # static unroll -> static slab indices
        w = w_ref[li]                      # (dp, dp)
        b = b_ref[li]                      # (dp, 1) -> broadcast over batch lanes
        h = jnp.dot(w, h, preferred_element_type=jnp.float32) + b
        if li != n_enc - 1 and li != n_layers - 1:
            # TODO(synk): nn.Dropout is identity at inference; intentionally a no-op.
            h = jnp.tanh(h)                # EUP slot, overlaps with MXU/VPU work
    out_ref[...] = h.astype(out_ref.dtype)


def pack_params(enc_params, dec_params, dtype=jnp.float32):
    """Pack all Linear layers into two zero-padded slabs. Done once, not per call."""
    params = list(enc_params) + list(dec_params)
    dims = [d for (w, _) in params for d in w.shape]
    dp = _round_up(max(dims), 8)           # sublane-aligned common feature width
    n_layers = len(params)
    w_slab = jnp.zeros((n_layers, dp, dp), dtype)
    b_slab = jnp.zeros((n_layers, dp, 1), dtype)
    for li, (w, b) in enumerate(params):   # w: (d_out, d_in), b: (d_out,)
        d_out, d_in = w.shape
        w_slab = w_slab.at[li, :d_out, :d_in].set(w.astype(dtype))
        b_slab = b_slab.at[li, :d_out, 0].set(b.astype(dtype))
    return w_slab, b_slab, len(enc_params)


@functools.partial(jax.jit, static_argnames=("n_enc", "d_out", "tb"))
def effective_dynamics_ae_forward(x, w_slab, b_slab, *, n_enc, d_out, tb=1024):
    """forward(inp) = decoder(encoder(inp)); inference mode (Dropout = identity).

    x: (B, d_in) float. Returns (B, d_out) in x.dtype.
    """
    B, d_in = x.shape
    n_layers, dp, _ = w_slab.shape

    # Lane-dense batch tile: multiple of 128, clamped so tiny batches use a
    # single grid step instead of over-tiling.
    tb_eff = _round_up(min(tb, _round_up(B, 128)), 128)
    b_pad = _round_up(B, tb_eff)

    # Boundary re-layout: batch -> lanes, features -> sublanes, zero pad.
    x_t = jnp.zeros((dp, b_pad), jnp.float32).at[:d_in, :B].set(
        x.T.astype(jnp.float32))

    kernel = functools.partial(_mlp_chain_kernel, n_layers, n_enc)
    out_t = pl.pallas_call(
        kernel,
        out_shape=jax.ShapeDtypeStruct((dp, b_pad), jnp.float32),
        grid=(b_pad // tb_eff,),
        in_specs=[
            pl.BlockSpec((dp, tb_eff), lambda i: (0, i)),
            # Parameter slabs: single full-array blocks, resident across the grid.
            pl.BlockSpec((n_layers, dp, dp), lambda i: (0, 0, 0)),
            pl.BlockSpec((n_layers, dp, 1), lambda i: (0, 0, 0)),
        ],
        out_specs=pl.BlockSpec((dp, tb_eff), lambda i: (0, i)),
        compiler_params=pltpu.CompilerParams(
            dimension_semantics=("parallel",)),
    )(x_t, w_slab, b_slab)

    # Undo boundary re-layout and padding.
    return out_t[:d_out, :B].T.astype(x.dtype)


# ---------------------------------------------------------------------------
# Deterministic parameter init (mimics PyTorch Linear default:
# U(-1/sqrt(fan_in), 1/sqrt(fan_in))), weights in PyTorch (d_out, d_in) layout.
# ---------------------------------------------------------------------------
def _init_linear(key, d_in, d_out):
    kw, kb = jax.random.split(key)
    bound = 1.0 / (d_in ** 0.5)
    w = jax.random.uniform(kw, (d_out, d_in), jnp.float32, -bound, bound)
    b = jax.random.uniform(kb, (d_out,), jnp.float32, -bound, bound)
    return w, b


def _init_mlp(key, dims):
    params = []
    for i in range(len(dims) - 1):
        key, sub = jax.random.split(key)
        params.append(_init_linear(sub, dims[i], dims[i + 1]))
    return params, key


def _mlp_ref(h, params):
    """Pure-JAX reference MLP (tanh on hidden layers, none on the last)."""
    n = len(params)
    for li, (w, b) in enumerate(params):
        h = h @ w.T + b
        if li != n - 1:
            h = jnp.tanh(h)
    return h


if __name__ == "__main__":
    # Typical shapes: 2-D position -> 1-D collective variable -> reconstructed 2-D.
    encoder_dims = [2, 32, 32, 1]
    decoder_dims = [1, 32, 32, 2]
    bias_dims = [1, 32, 1]        # ed_b / ed_d nets exist in __init__ but are not
    diff_dims = [1, 32, 1]        # used by forward(); created here only for parity.
    dropout = 0.1                 # inactive at inference

    key = jax.random.PRNGKey(0)
    enc_params, key = _init_mlp(key, encoder_dims)
    dec_params, key = _init_mlp(key, decoder_dims)
    _edb_params, key = _init_mlp(key, bias_dims)   # unused in forward
    _edd_params, key = _init_mlp(key, diff_dims)   # unused in forward

    # Pack/cast parameters once, hoisted out of the per-call forward path.
    w_slab, b_slab, n_enc = pack_params(enc_params, dec_params)

    # --- small-batch case: single grid step ---------------------------------
    B = 16
    key, kx = jax.random.split(key)
    x = jax.random.normal(kx, (B, encoder_dims[0]), jnp.float32)
    out = effective_dynamics_ae_forward(
        x, w_slab, b_slab, n_enc=n_enc, d_out=decoder_dims[-1])
    out = jax.block_until_ready(out)
    ref = _mlp_ref(_mlp_ref(x, enc_params), dec_params)
    assert out.shape == (B, decoder_dims[-1])
    assert jnp.allclose(out, ref, atol=1e-5, rtol=1e-5), "mismatch vs reference (B=16)"

    # --- multi-tile case: exercises the batch grid + padding path -----------
    B2 = 300
    key, kx2 = jax.random.split(key)
    x2 = jax.random.normal(kx2, (B2, encoder_dims[0]), jnp.float32)
    out2 = effective_dynamics_ae_forward(
        x2, w_slab, b_slab, n_enc=n_enc, d_out=decoder_dims[-1], tb=128)
    out2 = jax.block_until_ready(out2)
    ref2 = _mlp_ref(_mlp_ref(x2, enc_params), dec_params)
    assert out2.shape == (B2, decoder_dims[-1])
    assert jnp.allclose(out2, ref2, atol=1e-5, rtol=1e-5), "mismatch vs reference (B=300)"

    print("KERNEL_OK")
</pallas_src>

<mosaic_0001>
module attributes {stable_mosaic.version = 11 : i64} {
  func.func @_mlp_chain_kernel(%arg0: i32, %arg1: memref<32x128xf32, #tpu.memory_space<vmem>>, %arg2: memref<6x32x32xf32, #tpu.memory_space<vmem>>, %arg3: memref<6x32x1xf32, #tpu.memory_space<vmem>>, %arg4: memref<32x128xf32, #tpu.memory_space<vmem>>) attributes {dimension_semantics = [#tpu.dimension_semantics<parallel>], iteration_bounds = array<i64: 1>, scalar_prefetch = 0 : i64, scratch_operands = 0 : i64, tpu.core_type = #tpu.core_type<tc>, window_params = [{transform_indices = @transform_0, window_bounds = array<i64: 32, 128>}, {pipeline_mode = #tpu.pipeline_mode<synchronous>, transform_indices = @transform_1, window_bounds = array<i64: 6, 32, 32>}, {pipeline_mode = #tpu.pipeline_mode<synchronous>, transform_indices = @transform_2, window_bounds = array<i64: 6, 32, 1>}, {transform_indices = @transform_3, window_bounds = array<i64: 32, 128>}]} {
    %c0 = arith.constant 0 : index
    %c0_0 = arith.constant 0 : index
    %0 = vector.load %arg1[%c0, %c0_0] : memref<32x128xf32, #tpu.memory_space<vmem>>, vector<32x128xf32>
    %c0_1 = arith.constant 0 : index
    %c0_2 = arith.constant 0 : index
    %c0_3 = arith.constant 0 : index
    %1 = vector.load %arg2[%c0_1, %c0_2, %c0_3] : memref<6x32x32xf32, #tpu.memory_space<vmem>>, vector<1x32x32xf32>
    %2 = vector.shape_cast %1 : vector<1x32x32xf32> to vector<32x32xf32>
    %c0_4 = arith.constant 0 : index
    %c0_5 = arith.constant 0 : index
    %c0_6 = arith.constant 0 : index
    %3 = vector.load %arg3[%c0_4, %c0_5, %c0_6] : memref<6x32x1xf32, #tpu.memory_space<vmem>>, vector<1x32x1xf32>
    %4 = vector.shape_cast %3 : vector<1x32x1xf32> to vector<32x1xf32>
    %cst = arith.constant dense<0.000000e+00> : vector<32x128xf32>
    %5 = tpu.matmul %2, %0, %cst {dimension_numbers = #tpu.dot_dimension_numbers<[1], [0], [0], [1], [0, 0, 1, 1], [], []>} : vector<32x32xf32>, vector<32x128xf32>, vector<32x128xf32> -> vector<32x128xf32>
    %6 = vector.broadcast %4 : vector<32x1xf32> to vector<32x128xf32>
    %7 = arith.addf %5, %6 : vector<32x128xf32>
    %8 = math.tanh %7 : vector<32x128xf32>
    %c1 = arith.constant 1 : index
    %c0_7 = arith.constant 0 : index
    %c0_8 = arith.constant 0 : index
    %9 = vector.load %arg2[%c1, %c0_7, %c0_8] : memref<6x32x32xf32, #tpu.memory_space<vmem>>, vector<1x32x32xf32>
    %10 = vector.shape_cast %9 : vector<1x32x32xf32> to vector<32x32xf32>
    %c1_9 = arith.constant 1 : index
    %c0_10 = arith.constant 0 : index
    %c0_11 = arith.constant 0 : index
    %11 = vector.load %arg3[%c1_9, %c0_10, %c0_11] : memref<6x32x1xf32, #tpu.memory_space<vmem>>, vector<1x32x1xf32>
    %12 = vector.shape_cast %11 : vector<1x32x1xf32> to vector<32x1xf32>
    %cst_12 = arith.constant dense<0.000000e+00> : vector<32x128xf32>
    %13 = tpu.matmul %10, %8, %cst_12 {dimension_numbers = #tpu.dot_dimension_numbers<[1], [0], [0], [1], [0, 0, 1, 1], [], []>} : vector<32x32xf32>, vector<32x128xf32>, vector<32x128xf32> -> vector<32x128xf32>
    %14 = vector.broadcast %12 : vector<32x1xf32> to vector<32x128xf32>
    %15 = arith.addf %13, %14 : vector<32x128xf32>
    %16 = math.tanh %15 : vector<32x128xf32>
    %c2 = arith.constant 2 : index
    %c0_13 = arith.constant 0 : index
    %c0_14 = arith.constant 0 : index
    %17 = vector.load %arg2[%c2, %c0_13, %c0_14] : memref<6x32x32xf32, #tpu.memory_space<vmem>>, vector<1x32x32xf32>
    %18 = vector.shape_cast %17 : vector<1x32x32xf32> to vector<32x32xf32>
    %c2_15 = arith.constant 2 : index
    %c0_16 = arith.constant 0 : index
    %c0_17 = arith.constant 0 : index
    %19 = vector.load %arg3[%c2_15, %c0_16, %c0_17] : memref<6x32x1xf32, #tpu.memory_space<vmem>>, vector<1x32x1xf32>
    %20 = vector.shape_cast %19 : vector<1x32x1xf32> to vector<32x1xf32>
    %cst_18 = arith.constant dense<0.000000e+00> : vector<32x128xf32>
    %21 = tpu.matmul %18, %16, %cst_18 {dimension_numbers = #tpu.dot_dimension_numbers<[1], [0], [0], [1], [0, 0, 1, 1], [], []>} : vector<32x32xf32>, vector<32x128xf32>, vector<32x128xf32> -> vector<32x128xf32>
    %22 = vector.broadcast %20 : vector<32x1xf32> to vector<32x128xf32>
    %23 = arith.addf %21, %22 : vector<32x128xf32>
    %c3 = arith.constant 3 : index
    %c0_19 = arith.constant 0 : index
    %c0_20 = arith.constant 0 : index
    %24 = vector.load %arg2[%c3, %c0_19, %c0_20] : memref<6x32x32xf32, #tpu.memory_space<vmem>>, vector<1x32x32xf32>
    %25 = vector.shape_cast %24 : vector<1x32x32xf32> to vector<32x32xf32>
    %c3_21 = arith.constant 3 : index
    %c0_22 = arith.constant 0 : index
    %c0_23 = arith.constant 0 : index
    %26 = vector.load %arg3[%c3_21, %c0_22, %c0_23] : memref<6x32x1xf32, #tpu.memory_space<vmem>>, vector<1x32x1xf32>
    %27 = vector.shape_cast %26 : vector<1x32x1xf32> to vector<32x1xf32>
    %cst_24 = arith.constant dense<0.000000e+00> : vector<32x128xf32>
    %28 = tpu.matmul %25, %23, %cst_24 {dimension_numbers = #tpu.dot_dimension_numbers<[1], [0], [0], [1], [0, 0, 1, 1], [], []>} : vector<32x32xf32>, vector<32x128xf32>, vector<32x128xf32> -> vector<32x128xf32>
    %29 = vector.broadcast %27 : vector<32x1xf32> to vector<32x128xf32>
    %30 = arith.addf %28, %29 : vector<32x128xf32>
    %31 = math.tanh %30 : vector<32x128xf32>
    %c4 = arith.constant 4 : index
    %c0_25 = arith.constant 0 : index
    %c0_26 = arith.constant 0 : index
    %32 = vector.load %arg2[%c4, %c0_25, %c0_26] : memref<6x32x32xf32, #tpu.memory_space<vmem>>, vector<1x32x32xf32>
    %33 = vector.shape_cast %32 : vector<1x32x32xf32> to vector<32x32xf32>
    %c4_27 = arith.constant 4 : index
    %c0_28 = arith.constant 0 : index
    %c0_29 = arith.constant 0 : index
    %34 = vector.load %arg3[%c4_27, %c0_28, %c0_29] : memref<6x32x1xf32, #tpu.memory_space<vmem>>, vector<1x32x1xf32>
    %35 = vector.shape_cast %34 : vector<1x32x1xf32> to vector<32x1xf32>
    %cst_30 = arith.constant dense<0.000000e+00> : vector<32x128xf32>
    %36 = tpu.matmul %33, %31, %cst_30 {dimension_numbers = #tpu.dot_dimension_numbers<[1], [0], [0], [1], [0, 0, 1, 1], [], []>} : vector<32x32xf32>, vector<32x128xf32>, vector<32x128xf32> -> vector<32x128xf32>
    %37 = vector.broadcast %35 : vector<32x1xf32> to vector<32x128xf32>
    %38 = arith.addf %36, %37 : vector<32x128xf32>
    %39 = math.tanh %38 : vector<32x128xf32>
    %c5 = arith.constant 5 : index
    %c0_31 = arith.constant 0 : index
    %c0_32 = arith.constant 0 : index
    %40 = vector.load %arg2[%c5, %c0_31, %c0_32] : memref<6x32x32xf32, #tpu.memory_space<vmem>>, vector<1x32x32xf32>
    %41 = vector.shape_cast %40 : vector<1x32x32xf32> to vector<32x32xf32>
    %c5_33 = arith.constant 5 : index
    %c0_34 = arith.constant 0 : index
    %c0_35 = arith.constant 0 : index
    %42 = vector.load %arg3[%c5_33, %c0_34, %c0_35] : memref<6x32x1xf32, #tpu.memory_space<vmem>>, vector<1x32x1xf32>
    %43 = vector.shape_cast %42 : vector<1x32x1xf32> to vector<32x1xf32>
    %cst_36 = arith.constant dense<0.000000e+00> : vector<32x128xf32>
    %44 = tpu.matmul %41, %39, %cst_36 {dimension_numbers = #tpu.dot_dimension_numbers<[1], [0], [0], [1], [0, 0, 1, 1], [], []>} : vector<32x32xf32>, vector<32x128xf32>, vector<32x128xf32> -> vector<32x128xf32>
    %45 = vector.broadcast %43 : vector<32x1xf32> to vector<32x128xf32>
    %46 = arith.addf %44, %45 : vector<32x128xf32>
    %c0_37 = arith.constant 0 : index
    %c0_38 = arith.constant 0 : index
    %47 = vector.load %arg4[%c0_37, %c0_38] : memref<32x128xf32, #tpu.memory_space<vmem>>, vector<32x128xf32>
    tpu.vector_store %arg4[%c0_37, %c0_38], %46 {strides = array<i32>} : memref<32x128xf32, #tpu.memory_space<vmem>>, vector<32x128xf32>,
    return
  }
  func.func @transform_0(%arg0: i32) -> (i32, i32) {
    %c0_i32 = arith.constant 0 : i32
    %c0_i32_0 = arith.constant 0 : i32
    return %c0_i32, %arg0 : i32, i32
  }
  func.func @transform_1(%arg0: i32) -> (i32, i32, i32) {
    %c0_i32 = arith.constant 0 : i32
    %c0_i32_0 = arith.constant 0 : i32
    %c0_i32_1 = arith.constant 0 : i32
    %c0_i32_2 = arith.constant 0 : i32
    return %c0_i32, %c0_i32_0, %c0_i32_1 : i32, i32, i32
  }
  func.func @transform_2(%arg0: i32) -> (i32, i32, i32) {
    %c0_i32 = arith.constant 0 : i32
    %c0_i32_0 = arith.constant 0 : i32
    %c0_i32_1 = arith.constant 0 : i32
    %c0_i32_2 = arith.constant 0 : i32
    return %c0_i32, %c0_i32_0, %c0_i32_1 : i32, i32, i32
  }
  func.func @transform_3(%arg0: i32) -> (i32, i32) {
    %c0_i32 = arith.constant 0 : i32
    %c0_i32_0 = arith.constant 0 : i32
    return %c0_i32, %arg0 : i32, i32
  }
}

</mosaic_0001>

<llo_original>
// kernel: effective_dynamics_ae_forward.1
$region0: #{effective_dynamics_ae_forward.1}
  #allocation0 [shape = 'u32[]', space=smem, size = 0x4, offset = 0x4, fixed_abs, tag = 'smem constant byte address 0x4 - core index']
  #allocation1 [shape = 'u32[144,128]{1,0:T(1,128)}', space=vmem, size = 0x12000, scoped, tag = 'internal scratch']
  %s0 = inlined_call_operand.vmem [shape: f32[32,128], index: 0, kind: input, shape index: {}]
  %s1 = inlined_call_operand.vmem [shape: f32[6,32,32], index: 1, kind: input, shape index: {}]
  %s2 = inlined_call_operand.vmem [shape: f32[6,32,1], index: 2, kind: input, shape index: {}]
  %s3 = inlined_call_operand.vmem [shape: f32[32,128], index: 3, kind: output, shape index: {}]
  %s4 = sld [smem:[#allocation0]]
  $region22: #{effective_dynamics_ae_forward.1} parent=0
    _
  %s6 = ssub.s32 1, %s4
  %s7 = scalar_select 0, %s6, %s4
  // Predicated region
  $region2: #{effective_dynamics_ae_forward.1} parent=0 // pred_check
    _
  $region3: #{effective_dynamics_ae_forward.1} parent=0 // pred_check_branch
    %9 = sbr.rel (0) target = $region5
  $region4: #{effective_dynamics_ae_forward.1} parent=0 // pred_region
    _
  $region5: #{effective_dynamics_ae_forward.1} parent=0 // pred_fallthru
    _
  // Predicated region
  $region6: #{effective_dynamics_ae_forward.1} parent=0 // pred_check
    _
  $region7: #{effective_dynamics_ae_forward.1} parent=0 // pred_check_branch
    %11 = sbr.rel (0) target = $region9
  $region8: #{effective_dynamics_ae_forward.1} parent=0 // pred_region
    _
  $region9: #{effective_dynamics_ae_forward.1} parent=0 // pred_fallthru
    _
  // Predicated region
  $region10: #{effective_dynamics_ae_forward.1} parent=0 // pred_check
    _
  $region11: #{effective_dynamics_ae_forward.1} parent=0 // pred_check_branch
    %13 = sbr.rel (0) target = $region13
  $region12: #{effective_dynamics_ae_forward.1} parent=0 // pred_region
    _
  $region13: #{effective_dynamics_ae_forward.1} parent=0 // pred_fallthru
    _
  %v14 = vld [vmem:[%s0] sm:$0xff]
  %v15 = vld [vmem:[%s0 + $0x8] sm:$0xff]
  %v16 = vld [vmem:[%s0 + $0x10] sm:$0xff]
  %v17 = vld [vmem:[%s0 + $0x18] sm:$0xff]
  %v18 = vld [vmem:[%s1] sm:$0xff]
  %v19 = vld [vmem:[%s1 + $0x8] sm:$0xff]
  %v20 = vld [vmem:[%s1 + $0x10] sm:$0xff]
  %v21 = vld [vmem:[%s1 + $0x18] sm:$0xff]
  %v22 = vld [vmem:[%s2] sm:$0xff]
  %v23 = vld [vmem:[%s2 + $0x8] sm:$0xff]
  %v24 = vld [vmem:[%s2 + $0x10] sm:$0xff]
  %v25 = vld [vmem:[%s2 + $0x18] sm:$0xff]
  %27 = vset.pattern.permute.xlu0 0
  %28 = vperm.xlu0 %27, %v22
  %v29 = vpop.permute.xlu0 %28
  %32 = vset.pattern.permute.xlu0 0
  %33 = vperm.xlu0 %32, %v23
  %v34 = vpop.permute.xlu0 %33
  %37 = vset.pattern.permute.xlu0 0
  %38 = vperm.xlu0 %37, %v24
  %v39 = vpop.permute.xlu0 %38
  %42 = vset.pattern.permute.xlu0 0
  %43 = vperm.xlu0 %42, %v25
  %v44 = vpop.permute.xlu0 %43
  %vm46 = vcmask 261120
  %v48 = vsel %vm46, %v18, 0
  %v51 = vsel %vm46, %v19, 0
  %v54 = vsel %vm46, %v20, 0
  %v57 = vsel %vm46, %v21, 0
  %59 = vmatprep.subr.mxu0 0.0
  %60 = vmatpush1.msra.mxu0 %v14
  %61 = vmatprep.subr.mxu0 0.0
  %62 = vmatpush1.msra.mxu0 %v15
  %63 = vmatprep.subr.mxu0 0.0
  %64 = vmatpush1.msra.mxu0 %v16
  %65 = vmatprep.subr.mxu0 0.0
  %66 = vmatpush1.msra.mxu0 %v17
  %67 = vmatprep.subr.mxu0 0.0
  %68 = vmatpush1.msra.mxu0 0.0
  %69 = vmatprep.subr.mxu0 0.0
  %70 = vmatpush1.msra.mxu0 0.0
  %71 = vmatprep.subr.mxu0 0.0
  %72 = vmatpush1.msra.mxu0 0.0
  %73 = vmatprep.subr.mxu0 0.0
  %74 = vmatpush1.msra.mxu0 0.0
  %75 = vmatprep.subr.mxu0 0.0
  %76 = vmatpush1.msra.mxu0 0.0
  %77 = vmatprep.subr.mxu0 0.0
  %78 = vmatpush1.msra.mxu0 0.0
  %79 = vmatprep.subr.mxu0 0.0
  %80 = vmatpush1.msra.mxu0 0.0
  %81 = vmatprep.subr.mxu0 0.0
  %82 = vmatpush1.msra.mxu0 0.0
  %83 = vmatprep.subr.mxu0 0.0
  %84 = vmatpush1.msra.mxu0 0.0
  %85 = vmatprep.subr.mxu0 0.0
  %86 = vmatpush1.msra.mxu0 0.0
  %87 = vmatprep.subr.mxu0 0.0
  %88 = vmatpush1.msra.mxu0 0.0
  %89 = vmatprep.subr.mxu0 0.0
  %90 = vmatpush1.msra.mxu0 0.0
  %91 = vmatprep.subr.mxu0 0.0
  %92 = vmatpush1.msra.mxu0 0.0
  %93 = vmatprep.subr.mxu0 0.0
  %94 = vmatpush1.msra.mxu0 0.0
  %95 = vmatprep.subr.mxu0 0.0
  %96 = vmatpush1.msra.mxu0 0.0
  %97 = vmatprep.subr.mxu0 0.0
  %98 = vmatpush1.msra.mxu0 0.0
  %99 = vmatprep.subr.mxu0 0.0
  %100 = vmatpush1.msra.mxu0 0.0
  %101 = vmatprep.subr.mxu0 0.0
  %102 = vmatpush1.msra.mxu0 0.0
  %103 = vmatprep.subr.mxu0 0.0
  %104 = vmatpush1.msra.mxu0 0.0
  %105 = vmatprep.subr.mxu0 0.0
  %106 = vmatpush1.msra.mxu0 0.0
  %107 = vmatprep.subr.mxu0 0.0
  %108 = vmatpush1.msra.mxu0 0.0
  %109 = vmatprep.subr.mxu0 0.0
  %110 = vmatpush1.msra.mxu0 0.0
  %111 = vmatprep.subr.mxu0 0.0
  %112 = vmatpush1.msra.mxu0 0.0
  %113 = vmatprep.subr.mxu0 0.0
  %114 = vmatpush1.msra.mxu0 0.0
  %115 = vmatprep.subr.mxu0 0.0
  %116 = vmatpush1.msra.mxu0 0.0
  %117 = vmatprep.subr.mxu0 0.0
  %118 = vmatpush1.msra.mxu0 0.0
  %119 = vmatprep.subr.mxu0 0.0
  %120 = vmatpush1.msra.mxu0 0.0
  %121 = vmatprep.subr.mxu0 0.0
  %122 = vmatpush1.msra.mxu0 0.0
  %123 = vmatprep.mubr.f32.mxu0 0.0
  %124 = vmatmul.mubr.f32.gmra.mrb[0].mxu0 %v48
  %v125 = vpop.f32.mrb[0].mxu0
  %v126 = vadd.f32 %v29, %v125
  %v127 = vpop.f32.mrb[0].mxu0
  %128 = vmatprep.mubr.f32.mxu0 0.0
  %129 = vmatmul.mubr.f32.gmra.mrb[0].mxu0 %v51
  %v130 = vpop.f32.mrb[0].mxu0
  %v131 = vadd.f32 %v34, %v130
  %v132 = vpop.f32.mrb[0].mxu0
  %133 = vmatprep.mubr.f32.mxu0 0.0
  %134 = vmatmul.mubr.f32.gmra.mrb[0].mxu0 %v54
  %v135 = vpop.f32.mrb[0].mxu0
  %v136 = vadd.f32 %v39, %v135
  %v137 = vpop.f32.mrb[0].mxu0
  %138 = vmatprep.mubr.f32.mxu0 0.0
  %139 = vmatmul.mubr.f32.gmra.mrb[0].mxu0 %v57
  %v140 = vpop.f32.mrb[0].mxu0
  %v141 = vadd.f32 %v44, %v140
  %v142 = vpop.f32.mrb[0].mxu0
  %143 = vdwg.mxu0
  %v144 = vtanh.pop %v126
  %v145 = vtanh.pop %v131
  %v146 = vtanh.pop %v136
  %v147 = vtanh.pop %v141
  %s148 = scalar_lea.vmem %s1, 32
  %v149 = vld [vmem:[%s148] sm:$0xff]
  %v150 = vld [vmem:[%s148 + $0x8] sm:$0xff]
  %v151 = vld [vmem:[%s148 + $0x10] sm:$0xff]
  %v152 = vld [vmem:[%s148 + $0x18] sm:$0xff]
  %s153 = scalar_lea.vmem %s2, 32
  %v154 = vld [vmem:[%s153] sm:$0xff]
  %v155 = vld [vmem:[%s153 + $0x8] sm:$0xff]
  %v156 = vld [vmem:[%s153 + $0x10] sm:$0xff]
  %v157 = vld [vmem:[%s153 + $0x18] sm:$0xff]
  %159 = vset.pattern.permute.xlu0 0
  %160 = vperm.xlu0 %159, %v154
  %v161 = vpop.permute.xlu0 %160
  %164 = vset.pattern.permute.xlu0 0
  %165 = vperm.xlu0 %164, %v155
  %v166 = vpop.permute.xlu0 %165
  %169 = vset.pattern.permute.xlu0 0
  %170 = vperm.xlu0 %169, %v156
  %v171 = vpop.permute.xlu0 %170
  %174 = vset.pattern.permute.xlu0 0
  %175 = vperm.xlu0 %174, %v157
  %v176 = vpop.permute.xlu0 %175
  %v179 = vsel %vm46, %v149, 0
  %v182 = vsel %vm46, %v150, 0
  %v185 = vsel %vm46, %v151, 0
  %v188 = vsel %vm46, %v152, 0
  %190 = vmatprep.subr.mxu0 0.0
  %191 = vmatpush1.msra.mxu0 %v144
  %192 = vmatprep.subr.mxu0 0.0
  %193 = vmatpush1.msra.mxu0 %v145
  %194 = vmatprep.subr.mxu0 0.0
  %195 = vmatpush1.msra.mxu0 %v146
  %196 = vmatprep.subr.mxu0 0.0
  %197 = vmatpush1.msra.mxu0 %v147
  %198 = vmatprep.subr.mxu0 0.0
  %199 = vmatpush1.msra.mxu0 0.0
  %200 = vmatprep.subr.mxu0 0.0
  %201 = vmatpush1.msra.mxu0 0.0
  %202 = vmatprep.subr.mxu0 0.0
  %203 = vmatpush1.msra.mxu0 0.0
  %204 = vmatprep.subr.mxu0 0.0
  %205 = vmatpush1.msra.mxu0 0.0
  %206 = vmatprep.subr.mxu0 0.0
  %207 = vmatpush1.msra.mxu0 0.0
  %208 = vmatprep.subr.mxu0 0.0
  %209 = vmatpush1.msra.mxu0 0.0
  %210 = vmatprep.subr.mxu0 0.0
  %211 = vmatpush1.msra.mxu0 0.0
  %212 = vmatprep.subr.mxu0 0.0
  %213 = vmatpush1.msra.mxu0 0.0
  %214 = vmatprep.subr.mxu0 0.0
  %215 = vmatpush1.msra.mxu0 0.0
  %216 = vmatprep.subr.mxu0 0.0
  %217 = vmatpush1.msra.mxu0 0.0
  %218 = vmatprep.subr.mxu0 0.0
  %219 = vmatpush1.msra.mxu0 0.0
  %220 = vmatprep.subr.mxu0 0.0
  %221 = vmatpush1.msra.mxu0 0.0
  %222 = vmatprep.subr.mxu0 0.0
  %223 = vmatpush1.msra.mxu0 0.0
  %224 = vmatprep.subr.mxu0 0.0
  %225 = vmatpush1.msra.mxu0 0.0
  %226 = vmatprep.subr.mxu0 0.0
  %227 = vmatpush1.msra.mxu0 0.0
  %228 = vmatprep.subr.mxu0 0.0
  %229 = vmatpush1.msra.mxu0 0.0
  %230 = vmatprep.subr.mxu0 0.0
  %231 = vmatpush1.msra.mxu0 0.0
  %232 = vmatprep.subr.mxu0 0.0
  %233 = vmatpush1.msra.mxu0 0.0
  %234 = vmatprep.subr.mxu0 0.0
  %235 = vmatpush1.msra.mxu0 0.0
  %236 = vmatprep.subr.mxu0 0.0
  %237 = vmatpush1.msra.mxu0 0.0
  %238 = vmatprep.subr.mxu0 0.0
  %239 = vmatpush1.msra.mxu0 0.0
  %240 = vmatprep.subr.mxu0 0.0
  %241 = vmatpush1.msra.mxu0 0.0
  %242 = vmatprep.subr.mxu0 0.0
  %243 = vmatpush1.msra.mxu0 0.0
  %244 = vmatprep.subr.mxu0 0.0
  %245 = vmatpush1.msra.mxu0 0.0
  %246 = vmatprep.subr.mxu0 0.0
  %247 = vmatpush1.msra.mxu0 0.0
  %248 = vmatprep.subr.mxu0 0.0
  %249 = vmatpush1.msra.mxu0 0.0
  %250 = vmatprep.subr.mxu0 0.0
  %251 = vmatpush1.msra.mxu0 0.0
  %252 = vmatprep.subr.mxu0 0.0
  %253 = vmatpush1.msra.mxu0 0.0
  %254 = vmatprep.mubr.f32.mxu0 0.0
  %255 = vmatmul.mubr.f32.gmra.mrb[0].mxu0 %v179
  %v256 = vpop.f32.mrb[0].mxu0
  %v257 = vadd.f32 %v161, %v256
  %v258 = vpop.f32.mrb[0].mxu0
  %259 = vmatprep.mubr.f32.mxu0 0.0
  %260 = vmatmul.mubr.f32.gmra.mrb[0].mxu0 %v182
  %v261 = vpop.f32.mrb[0].mxu0
  %v262 = vadd.f32 %v166, %v261
  %v263 = vpop.f32.mrb[0].mxu0
  %264 = vmatprep.mubr.f32.mxu0 0.0
  %265 = vmatmul.mubr.f32.gmra.mrb[0].mxu0 %v185
  %v266 = vpop.f32.mrb[0].mxu0
  %v267 = vadd.f32 %v171, %v266
  %v268 = vpop.f32.mrb[0].mxu0
  %269 = vmatprep.mubr.f32.mxu0 0.0
  %270 = vmatmul.mubr.f32.gmra.mrb[0].mxu0 %v188
  %v271 = vpop.f32.mrb[0].mxu0
  %v272 = vadd.f32 %v176, %v271
  %v273 = vpop.f32.mrb[0].mxu0
  %274 = vdwg.mxu0
  %v275 = vtanh.pop %v257
  %v276 = vtanh.pop %v262
  %v277 = vtanh.pop %v267
  %v278 = vtanh.pop %v272
  %s279 = scalar_lea.vmem %s1, 64
  %v280 = vld [vmem:[%s279] sm:$0xff]
  %v281 = vld [vmem:[%s279 + $0x8] sm:$0xff]
  %v282 = vld [vmem:[%s279 + $0x10] sm:$0xff]
  %v283 = vld [vmem:[%s279 + $0x18] sm:$0xff]
  %s284 = scalar_lea.vmem %s2, 64
  %v285 = vld [vmem:[%s284] sm:$0xff]
  %v286 = vld [vmem:[%s284 + $0x8] sm:$0xff]
  %v287 = vld [vmem:[%s284 + $0x10] sm:$0xff]
  %v288 = vld [vmem:[%s284 + $0x18] sm:$0xff]
  %290 = vset.pattern.permute.xlu0 0
  %291 = vperm.xlu0 %290, %v285
  %v292 = vpop.permute.xlu0 %291
  %295 = vset.pattern.permute.xlu0 0
  %296 = vperm.xlu0 %295, %v286
  %v297 = vpop.permute.xlu0 %296
  %300 = vset.pattern.permute.xlu0 0
  %301 = vperm.xlu0 %300, %v287
  %v302 = vpop.permute.xlu0 %301
  %305 = vset.pattern.permute.xlu0 0
  %306 = vperm.xlu0 %305, %v288
  %v307 = vpop.permute.xlu0 %306
  %v310 = vsel %vm46, %v280, 0
  %v313 = vsel %vm46, %v281, 0
  %v316 = vsel %vm46, %v282, 0
  %v319 = vsel %vm46, %v283, 0
  %321 = vmatprep.subr.mxu0 0.0
  %322 = vmatpush1.msra.mxu0 %v275
  %323 = vmatprep.subr.mxu0 0.0
  %324 = vmatpush1.msra.mxu0 %v276
  %325 = vmatprep.subr.mxu0 0.0
  %326 = vmatpush1.msra.mxu0 %v277
  %327 = vmatprep.subr.mxu0 0.0
  %328 = vmatpush1.msra.mxu0 %v278
  %329 = vmatprep.subr.mxu0 0.0
  %330 = vmatpush1.msra.mxu0 0.0
  %331 = vmatprep.subr.mxu0 0.0
  %332 = vmatpush1.msra.mxu0 0.0
  %333 = vmatprep.subr.mxu0 0.0
  %334 = vmatpush1.msra.mxu0 0.0
  %335 = vmatprep.subr.mxu0 0.0
  %336 = vmatpush1.msra.mxu0 0.0
  %337 = vmatprep.subr.mxu0 0.0
  %338 = vmatpush1.msra.mxu0 0.0
  %339 = vmatprep.subr.mxu0 0.0
  %340 = vmatpush1.msra.mxu0 0.0
  %341 = vmatprep.subr.mxu0 0.0
  %342 = vmatpush1.msra.mxu0 0.0
  %343 = vmatprep.subr.mxu0 0.0
  %344 = vmatpush1.msra.mxu0 0.0
  %345 = vmatprep.subr.mxu0 0.0
  %346 = vmatpush1.msra.mxu0 0.0
  %347 = vmatprep.subr.mxu0 0.0
  %348 = vmatpush1.msra.mxu0 0.0
  %349 = vmatprep.subr.mxu0 0.0
  %350 = vmatpush1.msra.mxu0 0.0
  %351 = vmatprep.subr.mxu0 0.0
  %352 = vmatpush1.msra.mxu0 0.0
  %353 = vmatprep.subr.mxu0 0.0
  %354 = vmatpush1.msra.mxu0 0.0
  %355 = vmatprep.subr.mxu0 0.0
  %356 = vmatpush1.msra.mxu0 0.0
  %357 = vmatprep.subr.mxu0 0.0
  %358 = vmatpush1.msra.mxu0 0.0
  %359 = vmatprep.subr.mxu0 0.0
  %360 = vmatpush1.msra.mxu0 0.0
  %361 = vmatprep.subr.mxu0 0.0
  %362 = vmatpush1.msra.mxu0 0.0
  %363 = vmatprep.subr.mxu0 0.0
  %364 = vmatpush1.msra.mxu0 0.0
  %365 = vmatprep.subr.mxu0 0.0
  %366 = vmatpush1.msra.mxu0 0.0
  %367 = vmatprep.subr.mxu0 0.0
  %368 = vmatpush1.msra.mxu0 0.0
  %369 = vmatprep.subr.mxu0 0.0
  %370 = vmatpush1.msra.mxu0 0.0
  %371 = vmatprep.subr.mxu0 0.0
  %372 = vmatpush1.msra.mxu0 0.0
  %373 = vmatprep.subr.mxu0 0.0
  %374 = vmatpush1.msra.mxu0 0.0
  %375 = vmatprep.subr.mxu0 0.0
  %376 = vmatpush1.msra.mxu0 0.0
  %377 = vmatprep.subr.mxu0 0.0
  %378 = vmatpush1.msra.mxu0 0.0
  %379 = vmatprep.subr.mxu0 0.0
  %380 = vmatpush1.msra.mxu0 0.0
  %381 = vmatprep.subr.mxu0 0.0
  %382 = vmatpush1.msra.mxu0 0.0
  %383 = vmatprep.subr.mxu0 0.0
  %384 = vmatpush1.msra.mxu0 0.0
  %385 = vmatprep.mubr.f32.mxu0 0.0
  %386 = vmatmul.mubr.f32.gmra.mrb[0].mxu0 %v310
  %v387 = vpop.f32.mrb[0].mxu0
  %v388 = vadd.f32 %v292, %v387
  %v389 = vpop.f32.mrb[0].mxu0
  %390 = vmatprep.mubr.f32.mxu0 0.0
  %391 = vmatmul.mubr.f32.gmra.mrb[0].mxu0 %v313
  %v392 = vpop.f32.mrb[0].mxu0
  %v393 = vadd.f32 %v297, %v392
  %v394 = vpop.f32.mrb[0].mxu0
  %395 = vmatprep.mubr.f32.mxu0 0.0
  %396 = vmatmul.mubr.f32.gmra.mrb[0].mxu0 %v316
  %v397 = vpop.f32.mrb[0].mxu0
  %v398 = vadd.f32 %v302, %v397
  %v399 = vpop.f32.mrb[0].mxu0
  %400 = vmatprep.mubr.f32.mxu0 0.0
  %401 = vmatmul.mubr.f32.gmra.mrb[0].mxu0 %v319
  %v402 = vpop.f32.mrb[0].mxu0
  %v403 = vadd.f32 %v307, %v402
  %v404 = vpop.f32.mrb[0].mxu0
  %405 = vdwg.mxu0
  %s406 = scalar_lea.vmem %s1, 96
  %v407 = vld [vmem:[%s406] sm:$0xff]
  %v408 = vld [vmem:[%s406 + $0x8] sm:$0xff]
  %v409 = vld [vmem:[%s406 + $0x10] sm:$0xff]
  %v410 = vld [vmem:[%s406 + $0x18] sm:$0xff]
  %s411 = scalar_lea.vmem %s2, 96
  %v412 = vld [vmem:[%s411] sm:$0xff]
  %v413 = vld [vmem:[%s411 + $0x8] sm:$0xff]
  %v414 = vld [vmem:[%s411 + $0x10] sm:$0xff]
  %v415 = vld [vmem:[%s411 + $0x18] sm:$0xff]
  %417 = vset.pattern.permute.xlu0 0
  %418 = vperm.xlu0 %417, %v412
  %v419 = vpop.permute.xlu0 %418
  %422 = vset.pattern.permute.xlu0 0
  %423 = vperm.xlu0 %422, %v413
  %v424 = vpop.permute.xlu0 %423
  %427 = vset.pattern.permute.xlu0 0
  %428 = vperm.xlu0 %427, %v414
  %v429 = vpop.permute.xlu0 %428
  %432 = vset.pattern.permute.xlu0 0
  %433 = vperm.xlu0 %432, %v415
  %v434 = vpop.permute.xlu0 %433
  %v437 = vsel %vm46, %v407, 0
  %v440 = vsel %vm46, %v408, 0
  %v443 = vsel %vm46, %v409, 0
  %v446 = vsel %vm46, %v410, 0
  %448 = vmatprep.subr.mxu0 0.0
  %449 = vmatpush1.msra.mxu0 %v388
  %450 = vmatprep.subr.mxu0 0.0
  %451 = vmatpush1.msra.mxu0 %v393
  %452 = vmatprep.subr.mxu0 0.0
  %453 = vmatpush1.msra.mxu0 %v398
  %454 = vmatprep.subr.mxu0 0.0
  %455 = vmatpush1.msra.mxu0 %v403
  %456 = vmatprep.subr.mxu0 0.0
  %457 = vmatpush1.msra.mxu0 0.0
  %458 = vmatprep.subr.mxu0 0.0
  %459 = vmatpush1.msra.mxu0 0.0
  %460 = vmatprep.subr.mxu0 0.0
  %461 = vmatpush1.msra.mxu0 0.0
  %462 = vmatprep.subr.mxu0 0.0
  %463 = vmatpush1.msra.mxu0 0.0
  %464 = vmatprep.subr.mxu0 0.0
  %465 = vmatpush1.msra.mxu0 0.0
  %466 = vmatprep.subr.mxu0 0.0
  %467 = vmatpush1.msra.mxu0 0.0
  %468 = vmatprep.subr.mxu0 0.0
  %469 = vmatpush1.msra.mxu0 0.0
  %470 = vmatprep.subr.mxu0 0.0
  %471 = vmatpush1.msra.mxu0 0.0
  %472 = vmatprep.subr.mxu0 0.0
  %473 = vmatpush1.msra.mxu0 0.0
  %474 = vmatprep.subr.mxu0 0.0
  %475 = vmatpush1.msra.mxu0 0.0
  %476 = vmatprep.subr.mxu0 0.0
  %477 = vmatpush1.msra.mxu0 0.0
  %478 = vmatprep.subr.mxu0 0.0
  %479 = vmatpush1.msra.mxu0 0.0
  %480 = vmatprep.subr.mxu0 0.0
  %481 = vmatpush1.msra.mxu0 0.0
  %482 = vmatprep.subr.mxu0 0.0
  %483 = vmatpush1.msra.mxu0 0.0
  %484 = vmatprep.subr.mxu0 0.0
  %485 = vmatpush1.msra.mxu0 0.0
  %486 = vmatprep.subr.mxu0 0.0
  %487 = vmatpush1.msra.mxu0 0.0
  %488 = vmatprep.subr.mxu0 0.0
  %489 = vmatpush1.msra.mxu0 0.0
  %490 = vmatprep.subr.mxu0 0.0
  %491 = vmatpush1.msra.mxu0 0.0
  %492 = vmatprep.subr.mxu0 0.0
  %493 = vmatpush1.msra.mxu0 0.0
  %494 = vmatprep.subr.mxu0 0.0
  %495 = vmatpush1.msra.mxu0 0.0
  %496 = vmatprep.subr.mxu0 0.0
  %497 = vmatpush1.msra.mxu0 0.0
  %498 = vmatprep.subr.mxu0 0.0
  %499 = vmatpush1.msra.mxu0 0.0
  %500 = vmatprep.subr.mxu0 0.0
  %501 = vmatpush1.msra.mxu0 0.0
  %502 = vmatprep.subr.mxu0 0.0
  %503 = vmatpush1.msra.mxu0 0.0
  %504 = vmatprep.subr.mxu0 0.0
  %505 = vmatpush1.msra.mxu0 0.0
  %506 = vmatprep.subr.mxu0 0.0
  %507 = vmatpush1.msra.mxu0 0.0
  %508 = vmatprep.subr.mxu0 0.0
  %509 = vmatpush1.msra.mxu0 0.0
  %510 = vmatprep.subr.mxu0 0.0
  %511 = vmatpush1.msra.mxu0 0.0
  %512 = vmatprep.mubr.f32.mxu0 0.0
  %513 = vmatmul.mubr.f32.gmra.mrb[0].mxu0 %v437
  %v514 = vpop.f32.mrb[0].mxu0
  %v515 = vadd.f32 %v419, %v514
  %v516 = vpop.f32.mrb[0].mxu0
  %517 = vmatprep.mubr.f32.mxu0 0.0
  %518 = vmatmul.mubr.f32.gmra.mrb[0].mxu0 %v440
  %v519 = vpop.f32.mrb[0].mxu0
  %v520 = vadd.f32 %v424, %v519
  %v521 = vpop.f32.mrb[0].mxu0
  %522 = vmatprep.mubr.f32.mxu0 0.0
  %523 = vmatmul.mubr.f32.gmra.mrb[0].mxu0 %v443
  %v524 = vpop.f32.mrb[0].mxu0
  %v525 = vadd.f32 %v429, %v524
  %v526 = vpop.f32.mrb[0].mxu0
  %527 = vmatprep.mubr.f32.mxu0 0.0
  %528 = vmatmul.mubr.f32.gmra.mrb[0].mxu0 %v446
  %v529 = vpop.f32.mrb[0].mxu0
  %v530 = vadd.f32 %v434, %v529
  %v531 = vpop.f32.mrb[0].mxu0
  %532 = vdwg.mxu0
  %v533 = vtanh.pop %v515
  %v534 = vtanh.pop %v520
  %v535 = vtanh.pop %v525
  %v536 = vtanh.pop %v530
  %s537 = scalar_lea.vmem %s1, 128
  %v538 = vld [vmem:[%s537] sm:$0xff]
  %v539 = vld [vmem:[%s537 + $0x8] sm:$0xff]
  %v540 = vld [vmem:[%s537 + $0x10] sm:$0xff]
  %v541 = vld [vmem:[%s537 + $0x18] sm:$0xff]
  %s542 = scalar_lea.vmem %s2, 128
  %v543 = vld [vmem:[%s542] sm:$0xff]
  %v544 = vld [vmem:[%s542 + $0x8] sm:$0xff]
  %v545 = vld [vmem:[%s542 + $0x10] sm:$0xff]
  %v546 = vld [vmem:[%s542 + $0x18] sm:$0xff]
  %548 = vset.pattern.permute.xlu0 0
  %549 = vperm.xlu0 %548, %v543
  %v550 = vpop.permute.xlu0 %549
  %553 = vset.pattern.permute.xlu0 0
  %554 = vperm.xlu0 %553, %v544
  %v555 = vpop.permute.xlu0 %554
  %558 = vset.pattern.permute.xlu0 0
  %559 = vperm.xlu0 %558, %v545
  %v560 = vpop.permute.xlu0 %559
  %563 = vset.pattern.permute.xlu0 0
  %564 = vperm.xlu0 %563, %v546
  %v565 = vpop.permute.xlu0 %564
  %v568 = vsel %vm46, %v538, 0
  %v571 = vsel %vm46, %v539, 0
  %v574 = vsel %vm46, %v540, 0
  %v577 = vsel %vm46, %v541, 0
  %579 = vmatprep.subr.mxu0 0.0
  %580 = vmatpush1.msra.mxu0 %v533
  %581 = vmatprep.subr.mxu0 0.0
  %582 = vmatpush1.msra.mxu0 %v534
  %583 = vmatprep.subr.mxu0 0.0
  %584 = vmatpush1.msra.mxu0 %v535
  %585 = vmatprep.subr.mxu0 0.0
  %586 = vmatpush1.msra.mxu0 %v536
  %587 = vmatprep.subr.mxu0 0.0
  %588 = vmatpush1.msra.mxu0 0.0
  %589 = vmatprep.subr.mxu0 0.0
  %590 = vmatpush1.msra.mxu0 0.0
  %591 = vmatprep.subr.mxu0 0.0
  %592 = vmatpush1.msra.mxu0 0.0
  %593 = vmatprep.subr.mxu0 0.0
  %594 = vmatpush1.msra.mxu0 0.0
  %595 = vmatprep.subr.mxu0 0.0
  %596 = vmatpush1.msra.mxu0 0.0
  %597 = vmatprep.subr.mxu0 0.0
  %598 = vmatpush1.msra.mxu0 0.0
  %599 = vmatprep.subr.mxu0 0.0
  %600 = vmatpush1.msra.mxu0 0.0
  %601 = vmatprep.subr.mxu0 0.0
  %602 = vmatpush1.msra.mxu0 0.0
  %603 = vmatprep.subr.mxu0 0.0
  %604 = vmatpush1.msra.mxu0 0.0
  %605 = vmatprep.subr.mxu0 0.0
  %606 = vmatpush1.msra.mxu0 0.0
  %607 = vmatprep.subr.mxu0 0.0
  %608 = vmatpush1.msra.mxu0 0.0
  %609 = vmatprep.subr.mxu0 0.0
  %610 = vmatpush1.msra.mxu0 0.0
  %611 = vmatprep.subr.mxu0 0.0
  %612 = vmatpush1.msra.mxu0 0.0
  %613 = vmatprep.subr.mxu0 0.0
  %614 = vmatpush1.msra.mxu0 0.0
  %615 = vmatprep.subr.mxu0 0.0
  %616 = vmatpush1.msra.mxu0 0.0
  %617 = vmatprep.subr.mxu0 0.0
  %618 = vmatpush1.msra.mxu0 0.0
  %619 = vmatprep.subr.mxu0 0.0
  %620 = vmatpush1.msra.mxu0 0.0
  %621 = vmatprep.subr.mxu0 0.0
  %622 = vmatpush1.msra.mxu0 0.0
  %623 = vmatprep.subr.mxu0 0.0
  %624 = vmatpush1.msra.mxu0 0.0
  %625 = vmatprep.subr.mxu0 0.0
  %626 = vmatpush1.msra.mxu0 0.0
  %627 = vmatprep.subr.mxu0 0.0
  %628 = vmatpush1.msra.mxu0 0.0
  %629 = vmatprep.subr.mxu0 0.0
  %630 = vmatpush1.msra.mxu0 0.0
  %631 = vmatprep.subr.mxu0 0.0
  %632 = vmatpush1.msra.mxu0 0.0
  %633 = vmatprep.subr.mxu0 0.0
  %634 = vmatpush1.msra.mxu0 0.0
  %635 = vmatprep.subr.mxu0 0.0
  %636 = vmatpush1.msra.mxu0 0.0
  %637 = vmatprep.subr.mxu0 0.0
  %638 = vmatpush1.msra.mxu0 0.0
  %639 = vmatprep.subr.mxu0 0.0
  %640 = vmatpush1.msra.mxu0 0.0
  %641 = vmatprep.subr.mxu0 0.0
  %642 = vmatpush1.msra.mxu0 0.0
  %643 = vmatprep.mubr.f32.mxu0 0.0
  %644 = vmatmul.mubr.f32.gmra.mrb[0].mxu0 %v568
  %v645 = vpop.f32.mrb[0].mxu0
  %v646 = vadd.f32 %v550, %v645
  %v647 = vpop.f32.mrb[0].mxu0
  %648 = vmatprep.mubr.f32.mxu0 0.0
  %649 = vmatmul.mubr.f32.gmra.mrb[0].mxu0 %v571
  %v650 = vpop.f32.mrb[0].mxu0
  %v651 = vadd.f32 %v555, %v650
  %v652 = vpop.f32.mrb[0].mxu0
  %653 = vmatprep.mubr.f32.mxu0 0.0
  %654 = vmatmul.mubr.f32.gmra.mrb[0].mxu0 %v574
  %v655 = vpop.f32.mrb[0].mxu0
  %v656 = vadd.f32 %v560, %v655
  %v657 = vpop.f32.mrb[0].mxu0
  %658 = vmatprep.mubr.f32.mxu0 0.0
  %659 = vmatmul.mubr.f32.gmra.mrb[0].mxu0 %v577
  %v660 = vpop.f32.mrb[0].mxu0
  %v661 = vadd.f32 %v565, %v660
  %v662 = vpop.f32.mrb[0].mxu0
  %663 = vdwg.mxu0
  %v664 = vtanh.pop %v646
  %v665 = vtanh.pop %v651
  %v666 = vtanh.pop %v656
  %v667 = vtanh.pop %v661
  %s668 = scalar_lea.vmem %s1, 160
  %v669 = vld [vmem:[%s668] sm:$0xff]
  %v670 = vld [vmem:[%s668 + $0x8] sm:$0xff]
  %v671 = vld [vmem:[%s668 + $0x10] sm:$0xff]
  %v672 = vld [vmem:[%s668 + $0x18] sm:$0xff]
  %s673 = scalar_lea.vmem %s2, 160
  %v674 = vld [vmem:[%s673] sm:$0xff]
  %v675 = vld [vmem:[%s673 + $0x8] sm:$0xff]
  %v676 = vld [vmem:[%s673 + $0x10] sm:$0xff]
  %v677 = vld [vmem:[%s673 + $0x18] sm:$0xff]
  %679 = vset.pattern.permute.xlu0 0
  %680 = vperm.xlu0 %679, %v674
  %v681 = vpop.permute.xlu0 %680
  %684 = vset.pattern.permute.xlu0 0
  %685 = vperm.xlu0 %684, %v675
  %v686 = vpop.permute.xlu0 %685
  %689 = vset.pattern.permute.xlu0 0
  %690 = vperm.xlu0 %689, %v676
  %v691 = vpop.permute.xlu0 %690
  %694 = vset.pattern.permute.xlu0 0
  %695 = vperm.xlu0 %694, %v677
  %v696 = vpop.permute.xlu0 %695
  %v699 = vsel %vm46, %v669, 0
  %v702 = vsel %vm46, %v670, 0
  %v705 = vsel %vm46, %v671, 0
  %v708 = vsel %vm46, %v672, 0
  %710 = vmatprep.subr.mxu0 0.0
  %711 = vmatpush1.msra.mxu0 %v664
  %712 = vmatprep.subr.mxu0 0.0
  %713 = vmatpush1.msra.mxu0 %v665
  %714 = vmatprep.subr.mxu0 0.0
  %715 = vmatpush1.msra.mxu0 %v666
  %716 = vmatprep.subr.mxu0 0.0
  %717 = vmatpush1.msra.mxu0 %v667
  %718 = vmatprep.subr.mxu0 0.0
  %719 = vmatpush1.msra.mxu0 0.0
  %720 = vmatprep.subr.mxu0 0.0
  %721 = vmatpush1.msra.mxu0 0.0
  %722 = vmatprep.subr.mxu0 0.0
  %723 = vmatpush1.msra.mxu0 0.0
  %724 = vmatprep.subr.mxu0 0.0
  %725 = vmatpush1.msra.mxu0 0.0
  %726 = vmatprep.subr.mxu0 0.0
  %727 = vmatpush1.msra.mxu0 0.0
  %728 = vmatprep.subr.mxu0 0.0
  %729 = vmatpush1.msra.mxu0 0.0
  %730 = vmatprep.subr.mxu0 0.0
  %731 = vmatpush1.msra.mxu0 0.0
  %732 = vmatprep.subr.mxu0 0.0
  %733 = vmatpush1.msra.mxu0 0.0
  %734 = vmatprep.subr.mxu0 0.0
  %735 = vmatpush1.msra.mxu0 0.0
  %736 = vmatprep.subr.mxu0 0.0
  %737 = vmatpush1.msra.mxu0 0.0
  %738 = vmatprep.subr.mxu0 0.0
  %739 = vmatpush1.msra.mxu0 0.0
  %740 = vmatprep.subr.mxu0 0.0
  %741 = vmatpush1.msra.mxu0 0.0
  %742 = vmatprep.subr.mxu0 0.0
  %743 = vmatpush1.msra.mxu0 0.0
  %744 = vmatprep.subr.mxu0 0.0
  %745 = vmatpush1.msra.mxu0 0.0
  %746 = vmatprep.subr.mxu0 0.0
  %747 = vmatpush1.msra.mxu0 0.0
  %748 = vmatprep.subr.mxu0 0.0
  %749 = vmatpush1.msra.mxu0 0.0
  %750 = vmatprep.subr.mxu0 0.0
  %751 = vmatpush1.msra.mxu0 0.0
  %752 = vmatprep.subr.mxu0 0.0
  %753 = vmatpush1.msra.mxu0 0.0
  %754 = vmatprep.subr.mxu0 0.0
  %755 = vmatpush1.msra.mxu0 0.0
  %756 = vmatprep.subr.mxu0 0.0
  %757 = vmatpush1.msra.mxu0 0.0
  %758 = vmatprep.subr.mxu0 0.0
  %759 = vmatpush1.msra.mxu0 0.0
  %760 = vmatprep.subr.mxu0 0.0
  %761 = vmatpush1.msra.mxu0 0.0
  %762 = vmatprep.subr.mxu0 0.0
  %763 = vmatpush1.msra.mxu0 0.0
  %764 = vmatprep.subr.mxu0 0.0
  %765 = vmatpush1.msra.mxu0 0.0
  %766 = vmatprep.subr.mxu0 0.0
  %767 = vmatpush1.msra.mxu0 0.0
  %768 = vmatprep.subr.mxu0 0.0
  %769 = vmatpush1.msra.mxu0 0.0
  %770 = vmatprep.subr.mxu0 0.0
  %771 = vmatpush1.msra.mxu0 0.0
  %772 = vmatprep.subr.mxu0 0.0
  %773 = vmatpush1.msra.mxu0 0.0
  %774 = vmatprep.mubr.f32.mxu0 0.0
  %775 = vmatmul.mubr.f32.gmra.mrb[0].mxu0 %v699
  %v776 = vpop.f32.mrb[0].mxu0
  %v777 = vadd.f32 %v681, %v776
  %v778 = vpop.f32.mrb[0].mxu0
  %779 = vmatprep.mubr.f32.mxu0 0.0
  %780 = vmatmul.mubr.f32.gmra.mrb[0].mxu0 %v702
  %v781 = vpop.f32.mrb[0].mxu0
  %v782 = vadd.f32 %v686, %v781
  %v783 = vpop.f32.mrb[0].mxu0
  %784 = vmatprep.mubr.f32.mxu0 0.0
  %785 = vmatmul.mubr.f32.gmra.mrb[0].mxu0 %v705
  %v786 = vpop.f32.mrb[0].mxu0
  %v787 = vadd.f32 %v691, %v786
  %v788 = vpop.f32.mrb[0].mxu0
  %789 = vmatprep.mubr.f32.mxu0 0.0
  %790 = vmatmul.mubr.f32.gmra.mrb[0].mxu0 %v708
  %v791 = vpop.f32.mrb[0].mxu0
  %v792 = vadd.f32 %v696, %v791
  %v793 = vpop.f32.mrb[0].mxu0
  %794 = vdwg.mxu0
  %795 = vst [vmem:[%s3] sm:$0xff] %v777
  %796 = vst [vmem:[%s3 + $0x8] sm:$0xff] %v782
  %797 = vst [vmem:[%s3 + $0x10] sm:$0xff] %v787
  %798 = vst [vmem:[%s3 + $0x18] sm:$0xff] %v792
  // Predicated region
  $region14: #{effective_dynamics_ae_forward.1} parent=0 // pred_check
    _
  $region15: #{effective_dynamics_ae_forward.1} parent=0 // pred_check_branch
    %800 = sbr.rel (0) target = $region17
  $region16: #{effective_dynamics_ae_forward.1} parent=0 // pred_region
    _
  $region17: #{effective_dynamics_ae_forward.1} parent=0 // pred_fallthru
    _
  // Predicated region
  $region18: #{effective_dynamics_ae_forward.1} parent=0 // pred_check
    _
  $region19: #{effective_dynamics_ae_forward.1} parent=0 // pred_check_branch
    %802 = sbr.rel (0) target = $region21
  $region20: #{effective_dynamics_ae_forward.1} parent=0 // pred_region
    _
  $region21: #{effective_dynamics_ae_forward.1} parent=0 // pred_fallthru
    _

</llo_original>
